<compile_context>
chip_gen: v7x
topology: tpu7x:2x2x1
jax: 0.10.0
libtpu: 0.0.40
codegen_flags: <defaults>
</compile_context>

<pallas_src>
import math
from functools import lru_cache

import jax
import jax.numpy as jnp
from jax.experimental import pallas as pl
from jax.experimental.pallas import tpu as pltpu


# ----------------------------------------------------------------------------- #
# Helpers
# ----------------------------------------------------------------------------- #
def _round_up(x, m):
    return ((x + m - 1) // m) * m


# ----------------------------------------------------------------------------- #
# Pallas GEMM: K-tiled, bf16 operands, f32 accumulator, fused bias epilogue.
# ----------------------------------------------------------------------------- #
def _mm_bias_kernel(a_ref, b_ref, bias_ref, o_ref, acc_ref):
    @pl.when(pl.program_id(2) == 0)
    def _():
        acc_ref[...] = jnp.zeros_like(acc_ref)

    acc_ref[...] += jnp.dot(a_ref[...], b_ref[...],
                            preferred_element_type=jnp.float32)

    @pl.when(pl.program_id(2) == pl.num_programs(2) - 1)
    def _():
        o_ref[...] = acc_ref[...] + bias_ref[...]


@lru_cache(maxsize=None)
def _mm_call(Mp, Kp, Np, tm, tn, tk):
    return pl.pallas_call(
        _mm_bias_kernel,
        out_shape=jax.ShapeDtypeStruct((Mp, Np), jnp.float32),
        grid=(Mp // tm, Np // tn, Kp // tk),
        in_specs=[
            pl.BlockSpec((tm, tk), lambda i, j, k: (i, k)),
            pl.BlockSpec((tk, tn), lambda i, j, k: (k, j)),
            pl.BlockSpec((1, tn), lambda i, j, k: (0, j)),
        ],
        out_specs=pl.BlockSpec((tm, tn), lambda i, j, k: (i, j)),
        scratch_shapes=[pltpu.VMEM((tm, tn), jnp.float32)],
        compiler_params=pltpu.CompilerParams(
            dimension_semantics=("parallel", "parallel", "arbitrary"),
            vmem_limit_bytes=32 * 1024 * 1024,
        ),
    )


def pallas_matmul(a, b, bias=None):
    """(M,K) @ (K,N) [+ bias] -> (M,N) f32. bf16 operands, f32 MXU accumulation."""
    M, K = a.shape
    K2, N = b.shape
    assert K == K2
    a = a.astype(jnp.bfloat16)
    b = b.astype(jnp.bfloat16)

    tm = 256 if M >= 256 else (128 if M >= 128 else max(8, _round_up(M, 8)))
    Mp = _round_up(M, tm)
    Np = _round_up(N, 128)                      # lane-dense output
    tn = 256 if (Np >= 256 and Np % 256 == 0) else 128
    Kp = _round_up(K, 128)                      # dense A-tile loads
    tk = next(t for t in (512, 256, 128) if Kp % t == 0)

    if Mp != M or Kp != K:
        a = jnp.pad(a, ((0, Mp - M), (0, Kp - K)))
    if Kp != K or Np != N:
        b = jnp.pad(b, ((0, Kp - K), (0, Np - N)))
    if bias is None:
        bias_row = jnp.zeros((1, Np), jnp.float32)
    else:
        bias_row = jnp.pad(bias.astype(jnp.float32).reshape(1, N),
                           ((0, 0), (0, Np - N)))
    out = _mm_call(Mp, Kp, Np, tm, tn, tk)(a, b, bias_row)
    return out[:M, :N]


# ----------------------------------------------------------------------------- #
# Fused channels-last InstanceNorm+LeakyReLU and GroupNorm+ReLU kernels
# ----------------------------------------------------------------------------- #
def _in_lrelu_kernel(x_ref, g_ref, b_ref, o_ref):
    x = x_ref[0]                                          # (S, C)
    mean = jnp.mean(x, axis=0, keepdims=True)             # per-channel over space
    c = x - mean
    var = jnp.mean(c * c, axis=0, keepdims=True)
    y = c * jax.lax.rsqrt(var + 1e-5) * g_ref[...] + b_ref[...]
    o_ref[0] = jnp.where(y >= 0, y, 0.1 * y)              # LeakyReLU(0.1)


@lru_cache(maxsize=None)
def _in_call(B, S, C):
    return pl.pallas_call(
        _in_lrelu_kernel,
        out_shape=jax.ShapeDtypeStruct((B, S, C), jnp.float32),
        grid=(B,),
        in_specs=[
            pl.BlockSpec((1, S, C), lambda b: (b, 0, 0)),
            pl.BlockSpec((1, C), lambda b: (0, 0)),
            pl.BlockSpec((1, C), lambda b: (0, 0)),
        ],
        out_specs=pl.BlockSpec((1, S, C), lambda b: (b, 0, 0)),
        compiler_params=pltpu.CompilerParams(dimension_semantics=("parallel",)),
    )


def instance_norm_lrelu(x, gamma, beta):
    """x channels-last (B, ..., C); stats per (batch, channel) over spatial."""
    B, C = x.shape[0], x.shape[-1]
    S = int(math.prod(x.shape[1:-1]))
    out = _in_call(B, S, C)(x.reshape(B, S, C).astype(jnp.float32),
                            gamma.reshape(1, C), beta.reshape(1, C))
    return out.reshape(x.shape)


def _gn_relu_kernel(x_ref, g_ref, b_ref, p_ref, o_ref):
    x = x_ref[0]                                          # (S, C)
    S, C = x.shape
    inv_n = 1.0 / (2.0 * S)                               # group size = 2 channels
    s1 = jnp.sum(x, axis=0, keepdims=True)                # (1, C)
    s2 = jnp.sum(x * x, axis=0, keepdims=True)            # (1, C)
    st = jnp.concatenate([s1, s2, jnp.zeros((6, C), jnp.float32)], axis=0)
    gs = jnp.dot(st, p_ref[...], preferred_element_type=jnp.float32)  # pair sums
    mean = gs[0:1, :] * inv_n
    var = jnp.maximum(gs[1:2, :] * inv_n - mean * mean, 0.0)
    y = (x - mean) * jax.lax.rsqrt(var + 1e-5) * g_ref[...] + b_ref[...]
    o_ref[0] = jnp.maximum(y, 0.0)                        # ReLU


@lru_cache(maxsize=None)
def _gn_call(B, S, C):
    return pl.pallas_call(
        _gn_relu_kernel,
        out_shape=jax.ShapeDtypeStruct((B, S, C), jnp.float32),
        grid=(B,),
        in_specs=[
            pl.BlockSpec((1, S, C), lambda b: (b, 0, 0)),
            pl.BlockSpec((1, C), lambda b: (0, 0)),
            pl.BlockSpec((1, C), lambda b: (0, 0)),
            pl.BlockSpec((C, C), lambda b: (0, 0)),
        ],
        out_specs=pl.BlockSpec((1, S, C), lambda b: (b, 0, 0)),
        compiler_params=pltpu.CompilerParams(dimension_semantics=("parallel",)),
    )


@lru_cache(maxsize=None)
def _pair_sum_matrix(C):
    idx = jnp.arange(C)
    return (idx[:, None] // 2 == idx[None, :] // 2).astype(jnp.float32)


def group_norm_relu(x, gamma, beta):
    """GroupNorm with group size 2 (num_groups = C//2) + ReLU, channels-last."""
    B, C = x.shape[0], x.shape[-1]
    S = int(math.prod(x.shape[1:-1]))
    out = _gn_call(B, S, C)(x.reshape(B, S, C).astype(jnp.float32),
                            gamma.reshape(1, C), beta.reshape(1, C),
                            _pair_sum_matrix(C))
    return out.reshape(x.shape)


# ----------------------------------------------------------------------------- #
# Fused sigmoid-gate kernel (DFi): out * sigmoid(att), att broadcast along C
# ----------------------------------------------------------------------------- #
def _gate_kernel(x_ref, a_ref, o_ref):
    o_ref[...] = x_ref[...] * jax.nn.sigmoid(a_ref[...])


@lru_cache(maxsize=None)
def _gate_call(Mp, C, tr):
    return pl.pallas_call(
        _gate_kernel,
        out_shape=jax.ShapeDtypeStruct((Mp, C), jnp.float32),
        grid=(Mp // tr,),
        in_specs=[
            pl.BlockSpec((tr, C), lambda i: (i, 0)),
            pl.BlockSpec((tr, 1), lambda i: (i, 0)),
        ],
        out_specs=pl.BlockSpec((tr, C), lambda i: (i, 0)),
        compiler_params=pltpu.CompilerParams(dimension_semantics=("parallel",)),
    )


def pallas_gate(out2d, att2d):
    M, C = out2d.shape
    tr = min(512, max(8, _round_up(M, 8)))
    Mp = _round_up(M, tr)
    if Mp != M:
        out2d = jnp.pad(out2d, ((0, Mp - M), (0, 0)))
        att2d = jnp.pad(att2d, ((0, Mp - M), (0, 0)))
    return _gate_call(Mp, C, tr)(out2d, att2d)[:M]


# ----------------------------------------------------------------------------- #
# Conv / deconv building blocks (channels-last glue, Pallas GEMM core)
# ----------------------------------------------------------------------------- #
def conv3d(x, w, b):
    """x:(B,D,H,W,C) channels-last; w:(Cout,Cin,k,k,k) PyTorch layout; pad=(k-1)//2."""
    B, D, H, W, C = x.shape
    Cout, Cin, k = w.shape[0], w.shape[1], w.shape[2]
    if k == 1:
        xm = x.reshape(B * D * H * W, C)
        wm = w.reshape(Cout, Cin).T
    else:
        xp = jnp.pad(x, ((0, 0), (1, 1), (1, 1), (1, 1), (0, 0))).astype(jnp.bfloat16)
        pats = [xp[:, kd:kd + D, kh:kh + H, kw:kw + W, :]
                for kd in range(3) for kh in range(3) for kw in range(3)]
        xm = jnp.stack(pats, axis=4).reshape(B * D * H * W, 27 * C)
        wm = w.transpose(2, 3, 4, 1, 0).reshape(27 * Cin, Cout)
    y = pallas_matmul(xm, wm, b)
    return y.reshape(B, D, H, W, Cout)


def conv2d(x, w, b):
    """x:(B,H,W,C) channels-last; w:(Cout,Cin,k,k) PyTorch layout; pad=(k-1)//2."""
    B, H, W, C = x.shape
    Cout, Cin, k = w.shape[0], w.shape[1], w.shape[2]
    if k == 1:
        xm = x.reshape(B * H * W, C)
        wm = w.reshape(Cout, Cin).T
    else:
        xp = jnp.pad(x, ((0, 0), (1, 1), (1, 1), (0, 0))).astype(jnp.bfloat16)
        pats = [xp[:, kh:kh + H, kw:kw + W, :]
                for kh in range(3) for kw in range(3)]
        xm = jnp.stack(pats, axis=3).reshape(B * H * W, 9 * C)
        wm = w.transpose(2, 3, 1, 0).reshape(9 * Cin, Cout)
    y = pallas_matmul(xm, wm, b)
    return y.reshape(B, H, W, Cout)


def conv_transpose3d(x, w, b):
    """stride-2, kernel-2 transposed conv; x:(B,D,H,W,C), w:(Cin,Cout,2,2,2)."""
    B, D, H, W, C = x.shape
    Cout = w.shape[1]
    wm = w.reshape(C, Cout * 8)
    bias = jnp.repeat(b, 8) if b is not None else None
    y = pallas_matmul(x.reshape(B * D * H * W, C), wm, bias)
    y = y.reshape(B, D, H, W, Cout, 2, 2, 2)
    return y.transpose(0, 1, 5, 2, 6, 3, 7, 4).reshape(B, 2 * D, 2 * H, 2 * W, Cout)


def conv_transpose2d(x, w, b):
    """stride-2, kernel-2 transposed conv; x:(B,H,W,C), w:(Cin,Cout,2,2)."""
    B, H, W, C = x.shape
    Cout = w.shape[1]
    wm = w.reshape(C, Cout * 4)
    bias = jnp.repeat(b, 4) if b is not None else None
    y = pallas_matmul(x.reshape(B * H * W, C), wm, bias)
    y = y.reshape(B, H, W, Cout, 2, 2)
    return y.transpose(0, 1, 4, 2, 5, 3).reshape(B, 2 * H, 2 * W, Cout)


def maxpool3d(x):
    B, D, H, W, C = x.shape
    return x.reshape(B, D // 2, 2, H // 2, 2, W // 2, 2, C).max(axis=(2, 4, 6))


def avgpool2d(x):
    B, H, W, C = x.shape
    return x.reshape(B, H // 2, 2, W // 2, 2, C).mean(axis=(2, 4))


# ----------------------------------------------------------------------------- #
# Deterministic parameter init (PyTorch-layout weights)
# ----------------------------------------------------------------------------- #
class Rng:
    def __init__(self, seed):
        self.key = jax.random.PRNGKey(seed)

    def __call__(self):
        self.key, sub = jax.random.split(self.key)
        return sub


def init_norm(rng, c):
    return {"g": 1.0 + 0.1 * jax.random.normal(rng(), (c,), jnp.float32),
            "b": 0.05 * jax.random.normal(rng(), (c,), jnp.float32)}


def init_conv3d(rng, cin, cout, k, bias=True):
    w = jax.random.normal(rng(), (cout, cin, k, k, k), jnp.float32) / math.sqrt(cin * k ** 3)
    b = 0.01 * jax.random.normal(rng(), (cout,), jnp.float32) if bias else None
    return {"w": w, "b": b}


def init_conv2d(rng, cin, cout, k, bias=True):
    w = jax.random.normal(rng(), (cout, cin, k, k), jnp.float32) / math.sqrt(cin * k * k)
    b = 0.01 * jax.random.normal(rng(), (cout,), jnp.float32) if bias else None
    return {"w": w, "b": b}


def init_deconv3d(rng, cin, cout):
    w = jax.random.normal(rng(), (cin, cout, 2, 2, 2), jnp.float32) / math.sqrt(cin * 8)
    return {"w": w, "b": 0.01 * jax.random.normal(rng(), (cout,), jnp.float32)}


def init_deconv2d(rng, cin, cout):
    w = jax.random.normal(rng(), (cin, cout, 2, 2), jnp.float32) / math.sqrt(cin * 4)
    return {"w": w, "b": 0.01 * jax.random.normal(rng(), (cout,), jnp.float32)}


def init_conv_block3d(rng, cin, cout):
    # MONAI Convolution: conv3x3x3(pad=1,bias) -> InstanceNorm(affine) -> Dropout(0) -> LeakyReLU(0.1)
    return {"conv": init_conv3d(rng, cin, cout, 3, True), "norm": init_norm(rng, cout)}


def init_two_conv3d(rng, cin, cout):
    return {"conv_0": init_conv_block3d(rng, cin, cout),
            "conv_1": init_conv_block3d(rng, cout, cout)}


def init_double_conv2d(rng, cin, cout):
    return {"c1": init_conv2d(rng, cin, cout, 3, True), "n1": init_norm(rng, cout),
            "c2": init_conv2d(rng, cout, cout, 3, True), "n2": init_norm(rng, cout)}


def init_up2d(rng, cin, cout):
    return {"up": init_deconv2d(rng, cin, cin // 2),
            "conv": init_double_conv2d(rng, cin, cout)}


def init_unet2d(rng, features):
    downs, ups = [], []
    inc = features[0]
    for f in features[1:]:
        downs.append(init_double_conv2d(rng, inc, f))
        inc = f
    for f in reversed(features[:-1]):          # bilinear=False -> factor=1
        ups.append(init_up2d(rng, inc, f))
        inc = f
    return {"downs": downs, "ups": ups}


def init_dfi(rng, dim):
    return {"conv1": init_conv3d(rng, 2 * dim, dim, 1, bias=False),
            "conv2": init_conv3d(rng, dim, 1, 1, True),
            "conv3": init_conv3d(rng, dim, 1, 1, True)}


def init_upcat(rng, in_chns, cat_chns, out_chns, halves):
    up_chns = in_chns // 2 if halves else in_chns
    p = {"up": init_deconv3d(rng, in_chns, up_chns), "halves": halves}
    if halves:
        p["dfi"] = init_dfi(rng, out_chns)
    else:
        p["convs"] = init_two_conv3d(rng, cat_chns + up_chns, out_chns)
    return p


def init_model(rng, in_channels=1, out_channels=2, fea=(32, 64, 128, 256, 512, 32)):
    p = {"fea": fea}
    p["conv_0"] = init_two_conv3d(rng, in_channels, fea[0])
    p["down_1"] = init_two_conv3d(rng, fea[0], fea[1])
    p["down_2"] = init_two_conv3d(rng, fea[1], fea[2])
    p["down_3"] = init_two_conv3d(rng, fea[2], fea[3])
    p["down_4"] = init_two_conv3d(rng, fea[3], fea[4])
    p["upcat_4"] = init_upcat(rng, fea[4], fea[3], fea[3], True)
    p["upcat_3"] = init_upcat(rng, fea[3], fea[2], fea[2], True)
    p["upcat_2"] = init_upcat(rng, fea[2], fea[1], fea[1], True)
    p["upcat_1"] = init_upcat(rng, fea[1], fea[0], fea[5], False)
    p["final"] = init_conv3d(rng, fea[5], out_channels, 1, True)
    p["uc0"] = init_unet2d(rng, (fea[0], fea[1], fea[2], fea[3], fea[4]))
    p["uc1"] = init_unet2d(rng, (fea[1], fea[2], fea[3], fea[4]))
    p["uc2"] = init_unet2d(rng, (fea[2], fea[3], fea[4]))
    return p


# ----------------------------------------------------------------------------- #
# Forward pass (channels-last internally)
# ----------------------------------------------------------------------------- #
def conv_block3d(x, p):
    x = conv3d(x, p["conv"]["w"], p["conv"]["b"])
    return instance_norm_lrelu(x, p["norm"]["g"], p["norm"]["b"])


def two_conv3d(x, p):
    return conv_block3d(conv_block3d(x, p["conv_0"]), p["conv_1"])


def down3d(x, p):
    return two_conv3d(maxpool3d(x), p)


def double_conv2d(x, p):
    x = conv2d(x, p["c1"]["w"], p["c1"]["b"])
    x = group_norm_relu(x, p["n1"]["g"], p["n1"]["b"])
    x = conv2d(x, p["c2"]["w"], p["c2"]["b"])
    return group_norm_relu(x, p["n2"]["g"], p["n2"]["b"])


def up2d(x1, x2, p):
    x1 = conv_transpose2d(x1, p["up"]["w"], p["up"]["b"])
    dy = x2.shape[1] - x1.shape[1]
    dx = x2.shape[2] - x1.shape[2]
    if dy or dx:
        x1 = jnp.pad(x1, ((0, 0), (dy // 2, dy - dy // 2),
                          (dx // 2, dx - dx // 2), (0, 0)))
    return double_conv2d(jnp.concatenate([x2, x1], axis=-1), p["conv"])


def unet2d(x, p):
    skips = []
    for dp in p["downs"]:
        skips.append(x)
        x = double_conv2d(avgpool2d(x), dp)
    for up_p, skip in zip(p["ups"], reversed(skips)):
        x = up2d(x, skip, up_p)
    return x


def uc_skip(x, p):
    # 'B C D H W -> (B W) C D H' expressed in channels-last layout.
    B, D, H, W, C = x.shape
    x1 = x.transpose(0, 3, 1, 2, 4).reshape(B * W, D, H, C)
    x1 = unet2d(x1, p)
    Cn = x1.shape[-1]
    return x1.reshape(B, W, D, H, Cn).transpose(0, 2, 3, 1, 4)


def dfi(x1, x2, p):
    # Fuse the three 1x1 convs into one GEMM:
    #   cols [0:C)  <- conv1([x1,x2])   (no bias)      -> "out"
    #   col  [C]    <- conv2(x1)+conv3(x2)+b2+b3       -> "att"
    B, D, H, W, C = x2.shape
    cin2 = x1.shape[-1] + x2.shape[-1]
    w1 = p["conv1"]["w"].reshape(C, cin2).T                     # (2C, C)
    w23 = jnp.concatenate([p["conv2"]["w"].reshape(1, C).T,
                           p["conv3"]["w"].reshape(1, C).T], axis=0)  # (2C, 1)
    wbig = jnp.concatenate([w1, w23], axis=1)                   # (2C, C+1)
    bbig = jnp.concatenate([jnp.zeros((C,), jnp.float32),
                            (p["conv2"]["b"] + p["conv3"]["b"]).reshape(1)])
    xcat = jnp.concatenate([x1, x2], axis=-1).reshape(B * D * H * W, cin2)
    y = pallas_matmul(xcat, wbig, bbig)                         # (M, C+1)
    gated = pallas_gate(y[:, :C], y[:, C:C + 1])
    return gated.reshape(B, D, H, W, C)


def upcat(x, x_e, p):
    x0 = conv_transpose3d(x, p["up"]["w"], p["up"]["b"])
    pads = [(0, x_e.shape[1 + i] - x0.shape[1 + i]) for i in range(3)]
    if any(d for _, d in pads):
        x0 = jnp.pad(x0, ((0, 0),) + tuple(pads) + ((0, 0),), mode="edge")
    if p["halves"]:
        return dfi(x0, x_e, p["dfi"])
    return two_conv3d(jnp.concatenate([x_e, x0], axis=-1), p["convs"])


def uc_3dunet(x, p):
    x = x.transpose(0, 2, 3, 4, 1)          # NCDHW -> NDHWC (once)
    x0 = two_conv3d(x, p["conv_0"])
    x1 = down3d(x0, p["down_1"])
    x2 = down3d(x1, p["down_2"])
    x3 = down3d(x2, p["down_3"])
    x4 = down3d(x3, p["down_4"])
    x0 = uc_skip(x0, p["uc0"])
    x1 = uc_skip(x1, p["uc1"])
    x2 = uc_skip(x2, p["uc2"])
    u4 = upcat(x4, x3, p["upcat_4"])
    u3 = upcat(u4, x2, p["upcat_3"])
    u2 = upcat(u3, x1, p["upcat_2"])
    u1 = upcat(u2, x0, p["upcat_1"])
    logits = conv3d(u1, p["final"]["w"], p["final"]["b"])
    return logits.transpose(0, 4, 1, 2, 3)  # NDHWC -> NCDHW (once)


# ----------------------------------------------------------------------------- #
if __name__ == "__main__":
    params = init_model(Rng(42))                                  # deterministic weights
    key = jax.random.PRNGKey(0)
    x = jax.random.normal(key, (1, 1, 16, 16, 16), jnp.float32)   # B=1, Cin=1, D=H=W=16

    logits = uc_3dunet(x, params)
    logits = jax.block_until_ready(logits)

    assert logits.shape == (1, 2, 16, 16, 16), logits.shape
    assert bool(jnp.all(jnp.isfinite(logits)))
    print("KERNEL_OK")
</pallas_src>

<mosaic_0001>
module attributes {stable_mosaic.version = 11 : i64} {
  func.func @_mm_bias_kernel(%arg0: i32, %arg1: i32, %arg2: i32, %arg3: memref<256x128xbf16, #tpu.memory_space<vmem>>, %arg4: memref<128x128xbf16, #tpu.memory_space<vmem>>, %arg5: memref<1x128xf32, #tpu.memory_space<vmem>>, %arg6: memref<256x128xf32, #tpu.memory_space<vmem>>, %arg7: memref<256x128xf32, #tpu.memory_space<vmem>>) attributes {dimension_semantics = [#tpu.dimension_semantics<parallel>, #tpu.dimension_semantics<parallel>, #tpu.dimension_semantics<arbitrary>], iteration_bounds = array<i64: 16, 1, 1>, scalar_prefetch = 0 : i64, scratch_operands = 1 : i64, tpu.core_type = #tpu.core_type<tc>, window_params = [{transform_indices = @transform_0, window_bounds = array<i64: 256, 128>}, {transform_indices = @transform_1, window_bounds = array<i64: 128, 128>}, {transform_indices = @transform_2, window_bounds = array<i64: 1, 128>}, {transform_indices = @transform_3, window_bounds = array<i64: 256, 128>}]} {
    %c0_i32 = arith.constant 0 : i32
    %0 = arith.cmpi eq, %arg2, %c0_i32 : i32
    %1 = arith.extui %0 : i1 to i32
    %c0_i32_0 = arith.constant 0 : i32
    %2 = arith.cmpi ne, %1, %c0_i32_0 : i32
    scf.if %2 {
      %cst_10 = arith.constant 0.000000e+00 : f32
      %12 = vector.broadcast %cst_10 : f32 to vector<256x128xf32>
      %c0_11 = arith.constant 0 : index
      %c0_12 = arith.constant 0 : index
      %13 = vector.load %arg7[%c0_11, %c0_12] : memref<256x128xf32, #tpu.memory_space<vmem>>, vector<256x128xf32>
      tpu.vector_store %arg7[%c0_11, %c0_12], %12 {strides = array<i32>} : memref<256x128xf32, #tpu.memory_space<vmem>>, vector<256x128xf32>,
    } else {
    }
    %c0 = arith.constant 0 : index
    %c0_1 = arith.constant 0 : index
    %3 = vector.load %arg7[%c0, %c0_1] : memref<256x128xf32, #tpu.memory_space<vmem>>, vector<256x128xf32>
    %c0_2 = arith.constant 0 : index
    %c0_3 = arith.constant 0 : index
    %4 = vector.load %arg3[%c0_2, %c0_3] : memref<256x128xbf16, #tpu.memory_space<vmem>>, vector<256x128xbf16>
    %c0_4 = arith.constant 0 : index
    %c0_5 = arith.constant 0 : index
    %5 = vector.load %arg4[%c0_4, %c0_5] : memref<128x128xbf16, #tpu.memory_space<vmem>>, vector<128x128xbf16>
    %cst = arith.constant dense<0.000000e+00> : vector<256x128xf32>
    %6 = tpu.matmul %4, %5, %cst {dimension_numbers = #tpu.dot_dimension_numbers<[1], [0], [0], [1], [0, 0, 1, 1], [], []>} : vector<256x128xbf16>, vector<128x128xbf16>, vector<256x128xf32> -> vector<256x128xf32>
    %7 = arith.addf %3, %6 : vector<256x128xf32>
    %c0_6 = arith.constant 0 : index
    %c0_7 = arith.constant 0 : index
    %8 = vector.load %arg7[%c0_6, %c0_7] : memref<256x128xf32, #tpu.memory_space<vmem>>, vector<256x128xf32>
    tpu.vector_store %arg7[%c0_6, %c0_7], %7 {strides = array<i32>} : memref<256x128xf32, #tpu.memory_space<vmem>>, vector<256x128xf32>,
    %c0_i32_8 = arith.constant 0 : i32
    %9 = arith.cmpi eq, %arg2, %c0_i32_8 : i32
    %10 = arith.extui %9 : i1 to i32
    %c0_i32_9 = arith.constant 0 : i32
    %11 = arith.cmpi ne, %10, %c0_i32_9 : i32
    scf.if %11 {
      %c0_10 = arith.constant 0 : index
      %c0_11 = arith.constant 0 : index
      %12 = vector.load %arg7[%c0_10, %c0_11] : memref<256x128xf32, #tpu.memory_space<vmem>>, vector<256x128xf32>
      %c0_12 = arith.constant 0 : index
      %c0_13 = arith.constant 0 : index
      %13 = vector.load %arg5[%c0_12, %c0_13] : memref<1x128xf32, #tpu.memory_space<vmem>>, vector<1x128xf32>
      %14 = vector.broadcast %13 : vector<1x128xf32> to vector<256x128xf32>
      %15 = arith.addf %12, %14 : vector<256x128xf32>
      %c0_14 = arith.constant 0 : index
      %c0_15 = arith.constant 0 : index
      %16 = vector.load %arg6[%c0_14, %c0_15] : memref<256x128xf32, #tpu.memory_space<vmem>>, vector<256x128xf32>
      tpu.vector_store %arg6[%c0_14, %c0_15], %15 {strides = array<i32>} : memref<256x128xf32, #tpu.memory_space<vmem>>, vector<256x128xf32>,
    } else {
    }
    return
  }
  func.func @transform_0(%arg0: i32, %arg1: i32, %arg2: i32) -> (i32, i32) {
    %c0_i32 = arith.constant 0 : i32
    return %arg0, %arg2 : i32, i32
  }
  func.func @transform_1(%arg0: i32, %arg1: i32, %arg2: i32) -> (i32, i32) {
    %c0_i32 = arith.constant 0 : i32
    return %arg2, %arg1 : i32, i32
  }
  func.func @transform_2(%arg0: i32, %arg1: i32, %arg2: i32) -> (i32, i32) {
    %c0_i32 = arith.constant 0 : i32
    %c0_i32_0 = arith.constant 0 : i32
    return %c0_i32, %arg1 : i32, i32
  }
  func.func @transform_3(%arg0: i32, %arg1: i32, %arg2: i32) -> (i32, i32) {
    %c0_i32 = arith.constant 0 : i32
    return %arg0, %arg1 : i32, i32
  }
}

</mosaic_0001>

<llo_original>
// kernel: tpu_custom_call.1
$region0: #{tpu_custom_call.1}
  #allocation0 [shape = 'u32[]', space=smem, size = 0x4, offset = 0x4, fixed_abs, tag = 'smem constant byte address 0x4 - core index']
  #allocation1 [shape = 'u32[144,128]{1,0:T(1,128)}', space=vmem, size = 0x12000, scoped, tag = 'internal scratch']
  #allocation2 [shape = 'f32[256,128]{1,0:T(8,128)}', space=vmem, size = 0x20000, scoped, tag = 'scratch operand']
  %s0 = inlined_call_operand.hbm [shape: bf16[4096,128], index: 0, kind: input, shape index: {}]
  %s1 = inlined_call_operand.hbm [shape: bf16[128,128], index: 1, kind: input, shape index: {}]
  %s2 = inlined_call_operand.hbm [shape: f32[1,128], index: 2, kind: input, shape index: {}]
  %s3 = inlined_call_operand.hbm [shape: f32[4096,128], index: 3, kind: output, shape index: {}]
  %s4 = sld [smem:[#allocation0]]
  $region65: #{tpu_custom_call.1} parent=0
    _
  %s6 = ssub.s32 1, %s4
  %s7 = scalar_select 0, %s6, %s4
  $region1: #{tpu_custom_call.1} parent=0
    #allocation3 [shape = 'u8[131072]{0}', space=vmem, size = 0x20000, scoped, tag = 'input window, operand 0']
    #allocation4 [shape = 's32[2]{0}', space=sflag, size = 0x8, scoped, tag = 'scoped memory for tpu_custom_call.1']
    #allocation5 [shape = 's32[2]{0}', space=sflag, size = 0x8, scoped, tag = 'scoped memory for tpu_custom_call.1']
    #allocation6 [shape = 'u8[32768]{0}', space=vmem, size = 0x8000, scoped, tag = 'input window, operand 1, single buffered']
    #allocation7 [shape = 's32[1]{0}', space=sflag, size = 0x4, scoped, tag = 'scoped memory for tpu_custom_call.1']
    #allocation8 [shape = 'u8[512]{0}', space=vmem, size = 0x400, scoped, tag = 'input window, operand 2, single buffered']
    #allocation9 [shape = 'u8[262144]{0}', space=vmem, size = 0x40000, scoped, tag = 'output window, operand 0']
    %8 = vsyncpa [#allocation4], 0
    %s9 = scalar_lea.sflag [#allocation4], 1
    %10 = vsyncpa %s9, 0
    %11 = vsyncpa [#allocation7], 0
    %12 = vsyncpa [#allocation5], 0
    %s13 = scalar_lea.sflag [#allocation5], 1
    %14 = vsyncpa %s13, 0
    loop: start=0, step=1, limit=18
    $region2: #{tpu_custom_call.1} parent=1 // loop_pre_header
      _
    $region3: #{tpu_custom_call.1} parent=1 // loop_header
      %s16 = sphi 0, %s20
      %p17 = scmp.ge.s32.totalorder %s16, 18
      %s23 = sphi 0, %s42
      %s24 = sphi 0, %s38
      %s25 = sphi 0, %s34
      %s26 = sphi 0, %s23
      %s27 = sphi 0, %s24
      %s28 = sphi 0, %s25
      %s29 = sphi 0, %s26
      %s30 = sphi 0, %s27
      %s31 = sphi 0, %s28
      %s47 = sphi 0, %s49
      %s50 = sphi 0, %s47
      %s51 = sphi 0, %s50
      %s67 = sphi 0, %s51
      %s75 = sphi 0, %s77
      %s78 = sphi 0, %s75
      %s79 = sphi 0, %s78
      %s95 = sphi 0, %s79
      %s101 = sphi 0, %s103
      %s104 = sphi 0, %s101
      %s105 = sphi 0, %s104
      %s121 = sphi 0, %s105
      %s129 = sphi 0, %s131
      %s132 = sphi 0, %s129
      %s133 = sphi 0, %s132
      %s149 = sphi 0, %s133
    $region4: #{tpu_custom_call.1} parent=1 // loop_header_branch
      %19 = sbr.rel (%p17) target = $region8
    $region5: #{tpu_custom_call.1} parent=1 // loop_body
      %s21 = ssub.s32 %s16, 1
      %s22 = ssub.s32 %s16, 2
      %s32 = sadd.s32 1, %s25
      %p33 = scmp.ge.s32.totalorder %s32, 1
      %s34 = scalar_select %p33, 0, %s32
      %s35 = sadd.s32 1, %s24
      %s36 = scalar_select %p33, %s35, %s24
      %p37 = scmp.ge.s32.totalorder %s36, 1
      %s38 = scalar_select %p37, 0, %s36
      %s39 = sadd.s32 1, %s23
      %s40 = scalar_select %p37, %s39, %s23
      %p41 = scmp.ge.s32.totalorder %s40, 16
      %s42 = scalar_select %p41, 0, %s40
      %s43 = ssub.s32 %s23, %s42
      %s44 = ssub.s32 %s25, %s34
      %s45 = sor.u32 %s43, %s44
      %p46 = scmp.eq.s32.totalorder %s45, 0
      %s48 = sadd.s32 %s47, 1
      %s49 = scalar_select %p46, %s47, %s48
      %p52 = pneg %p46
      %p53 = scmp.eq.s32.totalorder %s16, 15
      %p54 = por %p52, %p53
      %p55 = scmp.ne.s32.totalorder %s47, %s50
      %p56 = scmp.eq.s32.totalorder %s16, 0
      %p57 = por %p55, %p56
      %p58 = scmp.ne.s32.totalorder %s47, %s50
      %p59 = scmp.eq.s32.totalorder %s21, 15
      %p60 = por %p58, %p59
      %p61 = scmp.ne.s32.totalorder %s50, %s51
      %p62 = scmp.eq.s32.totalorder %s21, 0
      %p63 = por %p61, %p62
      %p64 = scmp.ne.s32.totalorder %s50, %s51
      %p65 = scmp.eq.s32.totalorder %s22, 15
      %p66 = por %p64, %p65
      %p68 = scmp.ne.s32.totalorder %s51, %s67
      %p69 = scmp.eq.s32.totalorder %s22, 0
      %p70 = por %p68, %p69
      %s71 = ssub.s32 %s25, %s34
      %s72 = ssub.s32 %s24, %s38
      %s73 = sor.u32 %s71, %s72
      %p74 = scmp.eq.s32.totalorder %s73, 0
      %s76 = sadd.s32 %s75, 1
      %s77 = scalar_select %p74, %s75, %s76
      %p80 = pneg %p74
      %p81 = scmp.eq.s32.totalorder %s16, 15
      %p82 = por %p80, %p81
      %p83 = scmp.ne.s32.totalorder %s75, %s78
      %p84 = scmp.eq.s32.totalorder %s16, 0
      %p85 = por %p83, %p84
      %p86 = scmp.ne.s32.totalorder %s75, %s78
      %p87 = scmp.eq.s32.totalorder %s21, 15
      %p88 = por %p86, %p87
      %p89 = scmp.ne.s32.totalorder %s78, %s79
      %p90 = scmp.eq.s32.totalorder %s21, 0
      %p91 = por %p89, %p90
      %p92 = scmp.ne.s32.totalorder %s78, %s79
      %p93 = scmp.eq.s32.totalorder %s22, 15
      %p94 = por %p92, %p93
      %p96 = scmp.ne.s32.totalorder %s79, %s95
      %p97 = scmp.eq.s32.totalorder %s22, 0
      %p98 = por %p96, %p97
      %s99 = ssub.s32 %s24, %s38
      %p100 = scmp.eq.s32.totalorder %s99, 0
      %s102 = sadd.s32 %s101, 1
      %s103 = scalar_select %p100, %s101, %s102
      %p106 = pneg %p100
      %p107 = scmp.eq.s32.totalorder %s16, 15
      %p108 = por %p106, %p107
      %p109 = scmp.ne.s32.totalorder %s101, %s104
      %p110 = scmp.eq.s32.totalorder %s16, 0
      %p111 = por %p109, %p110
      %p112 = scmp.ne.s32.totalorder %s101, %s104
      %p113 = scmp.eq.s32.totalorder %s21, 15
      %p114 = por %p112, %p113
      %p115 = scmp.ne.s32.totalorder %s104, %s105
      %p116 = scmp.eq.s32.totalorder %s21, 0
      %p117 = por %p115, %p116
      %p118 = scmp.ne.s32.totalorder %s104, %s105
      %p119 = scmp.eq.s32.totalorder %s22, 15
      %p120 = por %p118, %p119
      %p122 = scmp.ne.s32.totalorder %s105, %s121
      %p123 = scmp.eq.s32.totalorder %s22, 0
      %p124 = por %p122, %p123
      %s125 = ssub.s32 %s23, %s42
      %s126 = ssub.s32 %s24, %s38
      %s127 = sor.u32 %s125, %s126
      %p128 = scmp.eq.s32.totalorder %s127, 0
      %s130 = sadd.s32 %s129, 1
      %s131 = scalar_select %p128, %s129, %s130
      %p134 = pneg %p128
      %p135 = scmp.eq.s32.totalorder %s16, 15
      %p136 = por %p134, %p135
      %p137 = scmp.ne.s32.totalorder %s129, %s132
      %p138 = scmp.eq.s32.totalorder %s16, 0
      %p139 = por %p137, %p138
      %p140 = scmp.ne.s32.totalorder %s129, %s132
      %p141 = scmp.eq.s32.totalorder %s21, 15
      %p142 = por %p140, %p141
      %p143 = scmp.ne.s32.totalorder %s132, %s133
      %p144 = scmp.eq.s32.totalorder %s21, 0
      %p145 = por %p143, %p144
      %p146 = scmp.ne.s32.totalorder %s132, %s133
      %p147 = scmp.eq.s32.totalorder %s22, 15
      %p148 = por %p146, %p147
      %p150 = scmp.ne.s32.totalorder %s133, %s149
      %p151 = scmp.eq.s32.totalorder %s22, 0
      %p152 = por %p150, %p151
      %p153 = scmp.le.s32.totalorder 1, %s16
      %p154 = scmp.lt.s32.totalorder %s16, 17
      %p155 = pnand %p153, %p154
      %p156 = pneg %p155
      // Predicated region
      $region9: #{tpu_custom_call.1} parent=5 // pred_check
        _
      $region10: #{tpu_custom_call.1} parent=5 // pred_check_branch
        %158 = sbr.rel (%p155) target = $region12
      $region11: #{tpu_custom_call.1} parent=5 // pred_region
        %s159 = ssub.s32 %s16, 1
        // Predicated region
        $region13: #{tpu_custom_call.1} parent=11 // pred_check
          %p160 = pneg %p91
        $region14: #{tpu_custom_call.1} parent=11 // pred_check_branch
          %162 = sbr.rel (%p160) target = $region16
        $region15: #{tpu_custom_call.1} parent=11 // pred_region
          %s163 = smul.u32 16, %s28
          %s165 = ssub.s32 1024, 1024
          %166 = vsyncadd [#allocation7], %s165
          %s167 = sadd.s32 %s27, %s163
          %s168 = smul.addr %s167, 64
          %s169 = scalar_lea.hbm %s1, %s168
          %s170 = sshll.u32 [#allocation6], 4
          %s171 = int_to_ptr.vmem [resolvable:$true] %s170
          %176 = dma.hbm_to_vmem [thread:$0]  %s169, 1024, %s171, [#allocation7], 64, 64, 4
        $region16: #{tpu_custom_call.1} parent=11 // pred_fallthru
          _
        // Predicated region
        $region17: #{tpu_custom_call.1} parent=11 // pred_check
          %p177 = pneg %p117
        $region18: #{tpu_custom_call.1} parent=11 // pred_check_branch
          %179 = sbr.rel (%p177) target = $region20
        $region19: #{tpu_custom_call.1} parent=11 // pred_region
          %s181 = ssub.s32 16, 16
          %182 = vsyncadd [#allocation7], %s181
          %s183 = smul.addr %s27, 16
          %s184 = scalar_lea.hbm %s2, %s183
          %s186 = sshll.u32 [#allocation8], 4
          %s187 = int_to_ptr.vmem [resolvable:$true] %s186
          %189 = dma.hbm_to_vmem [thread:$0]  %s184, 16, %s187, [#allocation7]
        $region20: #{tpu_custom_call.1} parent=11 // pred_fallthru
          _
      $region12: #{tpu_custom_call.1} parent=5 // pred_fallthru
        _
      %p190 = scmp.lt.s32.totalorder %s16, 16
      // Predicated region
      $region21: #{tpu_custom_call.1} parent=5 // pred_check
        %p191 = pneg %p190
      $region22: #{tpu_custom_call.1} parent=5 // pred_check_branch
        %193 = sbr.rel (%p191) target = $region24
      $region23: #{tpu_custom_call.1} parent=5 // pred_region
        // Predicated region
        $region25: #{tpu_custom_call.1} parent=23 // pred_check
          %p194 = pneg %p57
        $region26: #{tpu_custom_call.1} parent=23 // pred_check_branch
          %196 = sbr.rel (%p194) target = $region28
        $region27: #{tpu_custom_call.1} parent=23 // pred_region
          %s197 = sand.u32 %s47, 1
          %s198 = scalar_lea.sflag [#allocation4], %s197
          %s199 = sand.u32 %s47, 1
          %s200 = smul.addr %s199, 128
          %s201 = scalar_lea.vmem [#allocation3], %s200
          %s202 = smul.u32 32, %s23
          %s204 = ssub.s32 2048, 2048
          %205 = vsyncadd %s198, %s204
          %s206 = sadd.s32 %s25, %s202
          %s207 = smul.addr %s206, 64
          %s208 = scalar_lea.hbm %s0, %s207
          %s209 = sshll.u32 %s201, 4
          %s210 = int_to_ptr.vmem [resolvable:$true] %s209
          %215 = dma.hbm_to_vmem [thread:$0]  %s208, 2048, %s210, %s198, 64, 64, 4
        $region28: #{tpu_custom_call.1} parent=23 // pred_fallthru
          _
      $region24: #{tpu_custom_call.1} parent=5 // pred_fallthru
        _
      %p216 = scmp.le.s32.totalorder 1, %s16
      %p217 = scmp.lt.s32.totalorder %s16, 17
      %p218 = pnand %p216, %p217
      %p219 = pneg %p218
      // Predicated region
      $region29: #{tpu_custom_call.1} parent=5 // pred_check
        _
      $region30: #{tpu_custom_call.1} parent=5 // pred_check_branch
        %221 = sbr.rel (%p218) target = $region32
      $region31: #{tpu_custom_call.1} parent=5 // pred_region
        %s222 = ssub.s32 %s16, 1
        %s223 = sand.u32 %s50, 1
        %s224 = scalar_lea.sflag [#allocation4], %s223
        %s225 = sand.u32 %s50, 1
        %s226 = smul.addr %s225, 128
        %s227 = scalar_lea.vmem [#allocation3], %s226
        // Predicated region
        $region33: #{tpu_custom_call.1} parent=31 // pred_check
          %p228 = pneg %p63
        $region34: #{tpu_custom_call.1} parent=31 // pred_check_branch
          %230 = sbr.rel (%p228) target = $region36
        $region35: #{tpu_custom_call.1} parent=31 // pred_region
          %231 = dma.done %s224, 2048
        $region36: #{tpu_custom_call.1} parent=31 // pred_fallthru
          _
        // Predicated region
        $region37: #{tpu_custom_call.1} parent=31 // pred_check
          %p232 = pneg %p91
        $region38: #{tpu_custom_call.1} parent=31 // pred_check_branch
          %234 = sbr.rel (%p232) target = $region40
        $region39: #{tpu_custom_call.1} parent=31 // pred_region
          %235 = dma.done [#allocation7], 1024
        $region40: #{tpu_custom_call.1} parent=31 // pred_fallthru
          _
        // Predicated region
        $region41: #{tpu_custom_call.1} parent=31 // pred_check
          %p236 = pneg %p117
        $region42: #{tpu_custom_call.1} parent=31 // pred_check_branch
          %238 = sbr.rel (%p236) target = $region44
        $region43: #{tpu_custom_call.1} parent=31 // pred_region
          %239 = dma.done [#allocation7], 16
        $region44: #{tpu_custom_call.1} parent=31 // pred_fallthru
          _
        %s240 = sand.u32 %s50, 1
        %s241 = scalar_lea.sflag [#allocation4], %s240
        %s242 = sand.u32 %s50, 1
        %s243 = smul.addr %s242, 128
        %s244 = scalar_lea.vmem [#allocation3], %s243
        %p245 = pneg %p63
        %p246 = pneg %p60
        %p247 = pneg %p91
        %p248 = pneg %p88
        %p249 = pneg %p117
        %p250 = pneg %p114
        %p251 = pneg %p145
        %p252 = pneg %p142
        %s253 = sand.u32 %s132, 1
        %s254 = scalar_lea.sflag [#allocation5], %s253
        %s255 = sand.u32 %s132, 1
        %s256 = smul.addr %s255, 256
        %s257 = scalar_lea.vmem [#allocation9], %s256
        %s258 = smul.u32 32, %s26
        %s259 = smul.u32 16, %s28
        %s260 = smul.u32 32, %s26
        %p262 = scmp.eq.s32.totalorder %s28, 0
        // Predicated region
        $region45: #{tpu_custom_call.1} parent=31 // pred_check
          %p263 = pneg %p262
        $region46: #{tpu_custom_call.1} parent=31 // pred_check_branch
          %265 = sbr.rel (%p263) target = $region48
        $region47: #{tpu_custom_call.1} parent=31 // pred_region
          %266 = vst [vmem:[#allocation2] sm:$0xff] 0.0
          %267 = vst [vmem:[#allocation2 + $0x8] sm:$0xff] 0.0
          %268 = vst [vmem:[#allocation2 + $0x10] sm:$0xff] 0.0
          %269 = vst [vmem:[#allocation2 + $0x18] sm:$0xff] 0.0
          %270 = vst [vmem:[#allocation2 + $0x20] sm:$0xff] 0.0
          %271 = vst [vmem:[#allocation2 + $0x28] sm:$0xff] 0.0
          %272 = vst [vmem:[#allocation2 + $0x30] sm:$0xff] 0.0
          %273 = vst [vmem:[#allocation2 + $0x38] sm:$0xff] 0.0
          %274 = vst [vmem:[#allocation2 + $0x40] sm:$0xff] 0.0
          %275 = vst [vmem:[#allocation2 + $0x48] sm:$0xff] 0.0
          %276 = vst [vmem:[#allocation2 + $0x50] sm:$0xff] 0.0
          %277 = vst [vmem:[#allocation2 + $0x58] sm:$0xff] 0.0
          %278 = vst [vmem:[#allocation2 + $0x60] sm:$0xff] 0.0
          %279 = vst [vmem:[#allocation2 + $0x68] sm:$0xff] 0.0
          %280 = vst [vmem:[#allocation2 + $0x70] sm:$0xff] 0.0
          %281 = vst [vmem:[#allocation2 + $0x78] sm:$0xff] 0.0
          %282 = vst [vmem:[#allocation2 + $0x80] sm:$0xff] 0.0
          %283 = vst [vmem:[#allocation2 + $0x88] sm:$0xff] 0.0
          %284 = vst [vmem:[#allocation2 + $0x90] sm:$0xff] 0.0
          %285 = vst [vmem:[#allocation2 + $0x98] sm:$0xff] 0.0
          %286 = vst [vmem:[#allocation2 + $0xa0] sm:$0xff] 0.0
          %287 = vst [vmem:[#allocation2 + $0xa8] sm:$0xff] 0.0
          %288 = vst [vmem:[#allocation2 + $0xb0] sm:$0xff] 0.0
          %289 = vst [vmem:[#allocation2 + $0xb8] sm:$0xff] 0.0
          %290 = vst [vmem:[#allocation2 + $0xc0] sm:$0xff] 0.0
          %291 = vst [vmem:[#allocation2 + $0xc8] sm:$0xff] 0.0
          %292 = vst [vmem:[#allocation2 + $0xd0] sm:$0xff] 0.0
          %293 = vst [vmem:[#allocation2 + $0xd8] sm:$0xff] 0.0
          %294 = vst [vmem:[#allocation2 + $0xe0] sm:$0xff] 0.0
          %295 = vst [vmem:[#allocation2 + $0xe8] sm:$0xff] 0.0
          %296 = vst [vmem:[#allocation2 + $0xf0] sm:$0xff] 0.0
          %297 = vst [vmem:[#allocation2 + $0xf8] sm:$0xff] 0.0
        $region48: #{tpu_custom_call.1} parent=31 // pred_fallthru
          _
        %v298 = vld [vmem:[#allocation2] sm:$0xff]
        %v299 = vld [vmem:[#allocation2 + $0x8] sm:$0xff]
        %v300 = vld [vmem:[#allocation2 + $0x10] sm:$0xff]
        %v301 = vld [vmem:[#allocation2 + $0x18] sm:$0xff]
        %v302 = vld [vmem:[#allocation2 + $0x20] sm:$0xff]
        %v303 = vld [vmem:[#allocation2 + $0x28] sm:$0xff]
        %v304 = vld [vmem:[#allocation2 + $0x30] sm:$0xff]
        %v305 = vld [vmem:[#allocation2 + $0x38] sm:$0xff]
        %v306 = vld [vmem:[#allocation2 + $0x40] sm:$0xff]
        %v307 = vld [vmem:[#allocation2 + $0x48] sm:$0xff]
        %v308 = vld [vmem:[#allocation2 + $0x50] sm:$0xff]
        %v309 = vld [vmem:[#allocation2 + $0x58] sm:$0xff]
        %v310 = vld [vmem:[#allocation2 + $0x60] sm:$0xff]
        %v311 = vld [vmem:[#allocation2 + $0x68] sm:$0xff]
        %v312 = vld [vmem:[#allocation2 + $0x70] sm:$0xff]
        %v313 = vld [vmem:[#allocation2 + $0x78] sm:$0xff]
        %v314 = vld [vmem:[#allocation2 + $0x80] sm:$0xff]
        %v315 = vld [vmem:[#allocation2 + $0x88] sm:$0xff]
        %v316 = vld [vmem:[#allocation2 + $0x90] sm:$0xff]
        %v317 = vld [vmem:[#allocation2 + $0x98] sm:$0xff]
        %v318 = vld [vmem:[#allocation2 + $0xa0] sm:$0xff]
        %v319 = vld [vmem:[#allocation2 + $0xa8] sm:$0xff]
        %v320 = vld [vmem:[#allocation2 + $0xb0] sm:$0xff]
        %v321 = vld [vmem:[#allocation2 + $0xb8] sm:$0xff]
        %v322 = vld [vmem:[#allocation2 + $0xc0] sm:$0xff]
        %v323 = vld [vmem:[#allocation2 + $0xc8] sm:$0xff]
        %v324 = vld [vmem:[#allocation2 + $0xd0] sm:$0xff]
        %v325 = vld [vmem:[#allocation2 + $0xd8] sm:$0xff]
        %v326 = vld [vmem:[#allocation2 + $0xe0] sm:$0xff]
        %v327 = vld [vmem:[#allocation2 + $0xe8] sm:$0xff]
        %v328 = vld [vmem:[#allocation2 + $0xf0] sm:$0xff]
        %v329 = vld [vmem:[#allocation2 + $0xf8] sm:$0xff]
        %v330 = vld [vmem:[%s227] sm:$0xf]
        %v331 = vld [vmem:[%s227 + $0x4] sm:$0xf]
        %v332 = vld [vmem:[%s227 + $0x8] sm:$0xf]
        %v333 = vld [vmem:[%s227 + $0xc] sm:$0xf]
        %v334 = vld [vmem:[%s227 + $0x10] sm:$0xf]
        %v335 = vld [vmem:[%s227 + $0x14] sm:$0xf]
        %v336 = vld [vmem:[%s227 + $0x18] sm:$0xf]
        %v337 = vld [vmem:[%s227 + $0x1c] sm:$0xf]
        %v338 = vld [vmem:[%s227 + $0x20] sm:$0xf]
        %v339 = vld [vmem:[%s227 + $0x24] sm:$0xf]
        %v340 = vld [vmem:[%s227 + $0x28] sm:$0xf]
        %v341 = vld [vmem:[%s227 + $0x2c] sm:$0xf]
        %v342 = vld [vmem:[%s227 + $0x30] sm:$0xf]
        %v343 = vld [vmem:[%s227 + $0x34] sm:$0xf]
        %v344 = vld [vmem:[%s227 + $0x38] sm:$0xf]
        %v345 = vld [vmem:[%s227 + $0x3c] sm:$0xf]
        %v346 = vld [vmem:[%s227 + $0x40] sm:$0xf]
        %v347 = vld [vmem:[%s227 + $0x44] sm:$0xf]
        %v348 = vld [vmem:[%s227 + $0x48] sm:$0xf]
        %v349 = vld [vmem:[%s227 + $0x4c] sm:$0xf]
        %v350 = vld [vmem:[%s227 + $0x50] sm:$0xf]
        %v351 = vld [vmem:[%s227 + $0x54] sm:$0xf]
        %v352 = vld [vmem:[%s227 + $0x58] sm:$0xf]
        %v353 = vld [vmem:[%s227 + $0x5c] sm:$0xf]
        %v354 = vld [vmem:[%s227 + $0x60] sm:$0xf]
        %v355 = vld [vmem:[%s227 + $0x64] sm:$0xf]
        %v356 = vld [vmem:[%s227 + $0x68] sm:$0xf]
        %v357 = vld [vmem:[%s227 + $0x6c] sm:$0xf]
        %v358 = vld [vmem:[%s227 + $0x70] sm:$0xf]
        %v359 = vld [vmem:[%s227 + $0x74] sm:$0xf]
        %v360 = vld [vmem:[%s227 + $0x78] sm:$0xf]
        %v361 = vld [vmem:[%s227 + $0x7c] sm:$0xf]
        %v362 = vld [vmem:[#allocation6] sm:$0xf]
        %v363 = vld [vmem:[#allocation6 + $0x4] sm:$0xf]
        %v364 = vld [vmem:[#allocation6 + $0x8] sm:$0xf]
        %v365 = vld [vmem:[#allocation6 + $0xc] sm:$0xf]
        %v366 = vld [vmem:[#allocation6 + $0x10] sm:$0xf]
        %v367 = vld [vmem:[#allocation6 + $0x14] sm:$0xf]
        %v368 = vld [vmem:[#allocation6 + $0x18] sm:$0xf]
        %v369 = vld [vmem:[#allocation6 + $0x1c] sm:$0xf]
        %v370 = vld [vmem:[#allocation6 + $0x20] sm:$0xf]
        %v371 = vld [vmem:[#allocation6 + $0x24] sm:$0xf]
        %v372 = vld [vmem:[#allocation6 + $0x28] sm:$0xf]
        %v373 = vld [vmem:[#allocation6 + $0x2c] sm:$0xf]
        %v374 = vld [vmem:[#allocation6 + $0x30] sm:$0xf]
        %v375 = vld [vmem:[#allocation6 + $0x34] sm:$0xf]
        %v376 = vld [vmem:[#allocation6 + $0x38] sm:$0xf]
        %v377 = vld [vmem:[#allocation6 + $0x3c] sm:$0xf]
        %v410 = vunpack.c.l.b16 %v330
        %v411 = vunpack.c.l.b16 %v331
        %v412 = vunpack.c.l.b16 %v332
        %v413 = vunpack.c.l.b16 %v333
        %v414 = vunpack.c.l.b16 %v334
        %v415 = vunpack.c.l.b16 %v335
        %v416 = vunpack.c.l.b16 %v336
        %v417 = vunpack.c.l.b16 %v337
        %v418 = vunpack.c.l.b16 %v338
        %v419 = vunpack.c.l.b16 %v339
        %v420 = vunpack.c.l.b16 %v340
        %v421 = vunpack.c.l.b16 %v341
        %v422 = vunpack.c.l.b16 %v342
        %v423 = vunpack.c.l.b16 %v343
        %v424 = vunpack.c.l.b16 %v344
        %v425 = vunpack.c.l.b16 %v345
        %v426 = vunpack.c.l.b16 %v346
        %v427 = vunpack.c.l.b16 %v347
        %v428 = vunpack.c.l.b16 %v348
        %v429 = vunpack.c.l.b16 %v349
        %v430 = vunpack.c.l.b16 %v350
        %v431 = vunpack.c.l.b16 %v351
        %v432 = vunpack.c.l.b16 %v352
        %v433 = vunpack.c.l.b16 %v353
        %v434 = vunpack.c.l.b16 %v354
        %v435 = vunpack.c.l.b16 %v355
        %v436 = vunpack.c.l.b16 %v356
        %v437 = vunpack.c.l.b16 %v357
        %v438 = vunpack.c.l.b16 %v358
        %v439 = vunpack.c.l.b16 %v359
        %v440 = vunpack.c.l.b16 %v360
        %v441 = vunpack.c.l.b16 %v361
        %v442 = vpack.c.b16 %v411, %v410
        %v443 = vpack.c.b16 %v413, %v412
        %v444 = vpack.c.b16 %v415, %v414
        %v445 = vpack.c.b16 %v417, %v416
        %v446 = vpack.c.b16 %v419, %v418
        %v447 = vpack.c.b16 %v421, %v420
        %v448 = vpack.c.b16 %v423, %v422
        %v449 = vpack.c.b16 %v425, %v424
        %v450 = vpack.c.b16 %v427, %v426
        %v451 = vpack.c.b16 %v429, %v428
        %v452 = vpack.c.b16 %v431, %v430
        %v453 = vpack.c.b16 %v433, %v432
        %v454 = vpack.c.b16 %v435, %v434
        %v455 = vpack.c.b16 %v437, %v436
        %v456 = vpack.c.b16 %v439, %v438
        %v457 = vpack.c.b16 %v441, %v440
        %v490 = vunpack.c.l.b16 %v362
        %v491 = vunpack.c.l.b16 %v363
        %v492 = vunpack.c.l.b16 %v364
        %v493 = vunpack.c.l.b16 %v365
        %v494 = vunpack.c.l.b16 %v366
        %v495 = vunpack.c.l.b16 %v367
        %v496 = vunpack.c.l.b16 %v368
        %v497 = vunpack.c.l.b16 %v369
        %v498 = vunpack.c.l.b16 %v370
        %v499 = vunpack.c.l.b16 %v371
        %v500 = vunpack.c.l.b16 %v372
        %v501 = vunpack.c.l.b16 %v373
        %v502 = vunpack.c.l.b16 %v374
        %v503 = vunpack.c.l.b16 %v375
        %v504 = vunpack.c.l.b16 %v376
        %v505 = vunpack.c.l.b16 %v377
        %v506 = vpack.c.b16 %v491, %v490
        %v507 = vpack.c.b16 %v493, %v492
        %v508 = vpack.c.b16 %v495, %v494
        %v509 = vpack.c.b16 %v497, %v496
        %v510 = vpack.c.b16 %v499, %v498
        %v511 = vpack.c.b16 %v501, %v500
        %v512 = vpack.c.b16 %v503, %v502
        %v513 = vpack.c.b16 %v505, %v504
        %522 = vmatprep.subr.bf16.mxu0 0
        %523 = vmatpush1.bf16.msra.mxu0 %v506
        %524 = vmatprep.subr.bf16.mxu0 0
        %525 = vmatpush1.bf16.msra.mxu0 %v507
        %526 = vmatprep.subr.bf16.mxu0 0
        %527 = vmatpush1.bf16.msra.mxu0 %v508
        %528 = vmatprep.subr.bf16.mxu0 0
        %529 = vmatpush1.bf16.msra.mxu0 %v509
        %530 = vmatprep.subr.bf16.mxu0 0
        %531 = vmatpush1.bf16.msra.mxu0 %v510
        %532 = vmatprep.subr.bf16.mxu0 0
        %533 = vmatpush1.bf16.msra.mxu0 %v511
        %534 = vmatprep.subr.bf16.mxu0 0
        %535 = vmatpush1.bf16.msra.mxu0 %v512
        %536 = vmatprep.subr.bf16.mxu0 0
        %537 = vmatpush1.bf16.msra.mxu0 %v513
        %538 = vmatprep.subr.bf16.mxu0 0
        %539 = vmatpush1.bf16.msra.mxu0 0
        %540 = vmatprep.subr.bf16.mxu0 0
        %541 = vmatpush1.bf16.msra.mxu0 0
        %542 = vmatprep.subr.bf16.mxu0 0
        %543 = vmatpush1.bf16.msra.mxu0 0
        %544 = vmatprep.subr.bf16.mxu0 0
        %545 = vmatpush1.bf16.msra.mxu0 0
        %546 = vmatprep.subr.bf16.mxu0 0
        %547 = vmatpush1.bf16.msra.mxu0 0
        %548 = vmatprep.subr.bf16.mxu0 0
        %549 = vmatpush1.bf16.msra.mxu0 0
        %550 = vmatprep.subr.bf16.mxu0 0
        %551 = vmatpush1.bf16.msra.mxu0 0
        %552 = vmatprep.subr.bf16.mxu0 0
        %553 = vmatpush1.bf16.msra.mxu0 0
        %554 = vmatprep.mubr.bf16.mxu0 0
        %555 = vmatmul.mubr.bf16.gmra.mrb[0].mxu0 %v442
        %v556 = vpop.f32.mrb[0].mxu0
        %v557 = vadd.f32 0.0, %v556
        %v558 = vpop.f32.mrb[0].mxu0
        %v559 = vpop.f32.mrb[0].mxu0
        %v560 = vadd.f32 0.0, %v559
        %v561 = vpop.f32.mrb[0].mxu0
        %562 = vmatprep.mubr.bf16.mxu0 0
        %563 = vmatmul.mubr.bf16.gmra.mrb[0].mxu0 %v443
        %v564 = vpop.f32.mrb[0].mxu0
        %v565 = vadd.f32 0.0, %v564
        %v566 = vpop.f32.mrb[0].mxu0
        %v567 = vpop.f32.mrb[0].mxu0
        %v568 = vadd.f32 0.0, %v567
        %v569 = vpop.f32.mrb[0].mxu0
        %570 = vmatprep.mubr.bf16.mxu0 0
        %571 = vmatmul.mubr.bf16.gmra.mrb[0].mxu0 %v444
        %v572 = vpop.f32.mrb[0].mxu0
        %v573 = vadd.f32 0.0, %v572
        %v574 = vpop.f32.mrb[0].mxu0
        %v575 = vpop.f32.mrb[0].mxu0
        %v576 = vadd.f32 0.0, %v575
        %v577 = vpop.f32.mrb[0].mxu0
        %578 = vmatprep.mubr.bf16.mxu0 0
        %579 = vmatmul.mubr.bf16.gmra.mrb[0].mxu0 %v445
        %v580 = vpop.f32.mrb[0].mxu0
        %v581 = vadd.f32 0.0, %v580
        %v582 = vpop.f32.mrb[0].mxu0
        %v583 = vpop.f32.mrb[0].mxu0
        %v584 = vadd.f32 0.0, %v583
        %v585 = vpop.f32.mrb[0].mxu0
        %586 = vmatprep.mubr.bf16.mxu0 0
        %587 = vmatmul.mubr.bf16.gmra.mrb[0].mxu0 %v446
        %v588 = vpop.f32.mrb[0].mxu0
        %v589 = vadd.f32 0.0, %v588
        %v590 = vpop.f32.mrb[0].mxu0
        %v591 = vpop.f32.mrb[0].mxu0
        %v592 = vadd.f32 0.0, %v591
        %v593 = vpop.f32.mrb[0].mxu0
        %594 = vmatprep.mubr.bf16.mxu0 0
        %595 = vmatmul.mubr.bf16.gmra.mrb[0].mxu0 %v447
        %v596 = vpop.f32.mrb[0].mxu0
        %v597 = vadd.f32 0.0, %v596
        %v598 = vpop.f32.mrb[0].mxu0
        %v599 = vpop.f32.mrb[0].mxu0
        %v600 = vadd.f32 0.0, %v599
        %v601 = vpop.f32.mrb[0].mxu0
        %602 = vmatprep.mubr.bf16.mxu0 0
        %603 = vmatmul.mubr.bf16.gmra.mrb[0].mxu0 %v448
        %v604 = vpop.f32.mrb[0].mxu0
        %v605 = vadd.f32 0.0, %v604
        %v606 = vpop.f32.mrb[0].mxu0
        %v607 = vpop.f32.mrb[0].mxu0
        %v608 = vadd.f32 0.0, %v607
        %v609 = vpop.f32.mrb[0].mxu0
        %610 = vmatprep.mubr.bf16.mxu0 0
        %611 = vmatmul.mubr.bf16.gmra.mrb[0].mxu0 %v449
        %v612 = vpop.f32.mrb[0].mxu0
        %v613 = vadd.f32 0.0, %v612
        %v614 = vpop.f32.mrb[0].mxu0
        %v615 = vpop.f32.mrb[0].mxu0
        %v616 = vadd.f32 0.0, %v615
        %v617 = vpop.f32.mrb[0].mxu0
        %618 = vmatprep.mubr.bf16.mxu0 0
        %619 = vmatmul.mubr.bf16.gmra.mrb[0].mxu0 %v450
        %v620 = vpop.f32.mrb[0].mxu0
        %v621 = vadd.f32 0.0, %v620
        %v622 = vpop.f32.mrb[0].mxu0
        %v623 = vpop.f32.mrb[0].mxu0
        %v624 = vadd.f32 0.0, %v623
        %v625 = vpop.f32.mrb[0].mxu0
        %626 = vmatprep.mubr.bf16.mxu0 0
        %627 = vmatmul.mubr.bf16.gmra.mrb[0].mxu0 %v451
        %v628 = vpop.f32.mrb[0].mxu0
        %v629 = vadd.f32 0.0, %v628
        %v630 = vpop.f32.mrb[0].mxu0
        %v631 = vpop.f32.mrb[0].mxu0
        %v632 = vadd.f32 0.0, %v631
        %v633 = vpop.f32.mrb[0].mxu0
        %634 = vmatprep.mubr.bf16.mxu0 0
        %635 = vmatmul.mubr.bf16.gmra.mrb[0].mxu0 %v452
        %v636 = vpop.f32.mrb[0].mxu0
        %v637 = vadd.f32 0.0, %v636
        %v638 = vpop.f32.mrb[0].mxu0
        %v639 = vpop.f32.mrb[0].mxu0
        %v640 = vadd.f32 0.0, %v639
        %v641 = vpop.f32.mrb[0].mxu0
        %642 = vmatprep.mubr.bf16.mxu0 0
        %643 = vmatmul.mubr.bf16.gmra.mrb[0].mxu0 %v453
        %v644 = vpop.f32.mrb[0].mxu0
        %v645 = vadd.f32 0.0, %v644
        %v646 = vpop.f32.mrb[0].mxu0
        %v647 = vpop.f32.mrb[0].mxu0
        %v648 = vadd.f32 0.0, %v647
        %v649 = vpop.f32.mrb[0].mxu0
        %650 = vmatprep.mubr.bf16.mxu0 0
        %651 = vmatmul.mubr.bf16.gmra.mrb[0].mxu0 %v454
        %v652 = vpop.f32.mrb[0].mxu0
        %v653 = vadd.f32 0.0, %v652
        %v654 = vpop.f32.mrb[0].mxu0
        %v655 = vpop.f32.mrb[0].mxu0
        %v656 = vadd.f32 0.0, %v655
        %v657 = vpop.f32.mrb[0].mxu0
        %658 = vmatprep.mubr.bf16.mxu0 0
        %659 = vmatmul.mubr.bf16.gmra.mrb[0].mxu0 %v455
        %v660 = vpop.f32.mrb[0].mxu0
        %v661 = vadd.f32 0.0, %v660
        %v662 = vpop.f32.mrb[0].mxu0
        %v663 = vpop.f32.mrb[0].mxu0
        %v664 = vadd.f32 0.0, %v663
        %v665 = vpop.f32.mrb[0].mxu0
        %666 = vmatprep.mubr.bf16.mxu0 0
        %667 = vmatmul.mubr.bf16.gmra.mrb[0].mxu0 %v456
        %v668 = vpop.f32.mrb[0].mxu0
        %v669 = vadd.f32 0.0, %v668
        %v670 = vpop.f32.mrb[0].mxu0
        %v671 = vpop.f32.mrb[0].mxu0
        %v672 = vadd.f32 0.0, %v671
        %v673 = vpop.f32.mrb[0].mxu0
        %674 = vmatprep.mubr.bf16.mxu0 0
        %675 = vmatmul.mubr.bf16.gmra.mrb[0].mxu0 %v457
        %v676 = vpop.f32.mrb[0].mxu0
        %v677 = vadd.f32 0.0, %v676
        %v678 = vpop.f32.mrb[0].mxu0
        %v679 = vpop.f32.mrb[0].mxu0
        %v680 = vadd.f32 0.0, %v679
        %v681 = vpop.f32.mrb[0].mxu0
        %682 = vdwg.mxu0
        %v683 = vadd.f32 %v298, %v557
        %v684 = vadd.f32 %v299, %v560
        %v685 = vadd.f32 %v300, %v565
        %v686 = vadd.f32 %v301, %v568
        %v687 = vadd.f32 %v302, %v573
        %v688 = vadd.f32 %v303, %v576
        %v689 = vadd.f32 %v304, %v581
        %v690 = vadd.f32 %v305, %v584
        %v691 = vadd.f32 %v306, %v589
        %v692 = vadd.f32 %v307, %v592
        %v693 = vadd.f32 %v308, %v597
        %v694 = vadd.f32 %v309, %v600
        %v695 = vadd.f32 %v310, %v605
        %v696 = vadd.f32 %v311, %v608
        %v697 = vadd.f32 %v312, %v613
        %v698 = vadd.f32 %v313, %v616
        %v699 = vadd.f32 %v314, %v621
        %v700 = vadd.f32 %v315, %v624
        %v701 = vadd.f32 %v316, %v629
        %v702 = vadd.f32 %v317, %v632
        %v703 = vadd.f32 %v318, %v637
        %v704 = vadd.f32 %v319, %v640
        %v705 = vadd.f32 %v320, %v645
        %v706 = vadd.f32 %v321, %v648
        %v707 = vadd.f32 %v322, %v653
        %v708 = vadd.f32 %v323, %v656
        %v709 = vadd.f32 %v324, %v661
        %v710 = vadd.f32 %v325, %v664
        %v711 = vadd.f32 %v326, %v669
        %v712 = vadd.f32 %v327, %v672
        %v713 = vadd.f32 %v328, %v677
        %v714 = vadd.f32 %v329, %v680
        %715 = vst [vmem:[#allocation2] sm:$0xff] %v683
        %716 = vst [vmem:[#allocation2 + $0x8] sm:$0xff] %v684
        %717 = vst [vmem:[#allocation2 + $0x10] sm:$0xff] %v685
        %718 = vst [vmem:[#allocation2 + $0x18] sm:$0xff] %v686
        %719 = vst [vmem:[#allocation2 + $0x20] sm:$0xff] %v687
        %720 = vst [vmem:[#allocation2 + $0x28] sm:$0xff] %v688
        %721 = vst [vmem:[#allocation2 + $0x30] sm:$0xff] %v689
        %722 = vst [vmem:[#allocation2 + $0x38] sm:$0xff] %v690
        %723 = vst [vmem:[#allocation2 + $0x40] sm:$0xff] %v691
        %724 = vst [vmem:[#allocation2 + $0x48] sm:$0xff] %v692
        %725 = vst [vmem:[#allocation2 + $0x50] sm:$0xff] %v693
        %726 = vst [vmem:[#allocation2 + $0x58] sm:$0xff] %v694
        %727 = vst [vmem:[#allocation2 + $0x60] sm:$0xff] %v695
        %728 = vst [vmem:[#allocation2 + $0x68] sm:$0xff] %v696
        %729 = vst [vmem:[#allocation2 + $0x70] sm:$0xff] %v697
        %730 = vst [vmem:[#allocation2 + $0x78] sm:$0xff] %v698
        %731 = vst [vmem:[#allocation2 + $0x80] sm:$0xff] %v699
        %732 = vst [vmem:[#allocation2 + $0x88] sm:$0xff] %v700
        %733 = vst [vmem:[#allocation2 + $0x90] sm:$0xff] %v701
        %734 = vst [vmem:[#allocation2 + $0x98] sm:$0xff] %v702
        %735 = vst [vmem:[#allocation2 + $0xa0] sm:$0xff] %v703
        %736 = vst [vmem:[#allocation2 + $0xa8] sm:$0xff] %v704
        %737 = vst [vmem:[#allocation2 + $0xb0] sm:$0xff] %v705
        %738 = vst [vmem:[#allocation2 + $0xb8] sm:$0xff] %v706
        %739 = vst [vmem:[#allocation2 + $0xc0] sm:$0xff] %v707
        %740 = vst [vmem:[#allocation2 + $0xc8] sm:$0xff] %v708
        %741 = vst [vmem:[#allocation2 + $0xd0] sm:$0xff] %v709
        %742 = vst [vmem:[#allocation2 + $0xd8] sm:$0xff] %v710
        %743 = vst [vmem:[#allocation2 + $0xe0] sm:$0xff] %v711
        %744 = vst [vmem:[#allocation2 + $0xe8] sm:$0xff] %v712
        %745 = vst [vmem:[#allocation2 + $0xf0] sm:$0xff] %v713
        %746 = vst [vmem:[#allocation2 + $0xf8] sm:$0xff] %v714
        // Predicated region
        $region49: #{tpu_custom_call.1} parent=31 // pred_check
          %p747 = pneg %p262
        $region50: #{tpu_custom_call.1} parent=31 // pred_check_branch
          %749 = sbr.rel (%p747) target = $region52
        $region51: #{tpu_custom_call.1} parent=31 // pred_region
          %v750 = vld [vmem:[#allocation2] sm:$0xff]
          %v751 = vld [vmem:[#allocation2 + $0x8] sm:$0xff]
          %v752 = vld [vmem:[#allocation2 + $0x10] sm:$0xff]
          %v753 = vld [vmem:[#allocation2 + $0x18] sm:$0xff]
          %v754 = vld [vmem:[#allocation2 + $0x20] sm:$0xff]
          %v755 = vld [vmem:[#allocation2 + $0x28] sm:$0xff]
          %v756 = vld [vmem:[#allocation2 + $0x30] sm:$0xff]
          %v757 = vld [vmem:[#allocation2 + $0x38] sm:$0xff]
          %v758 = vld [vmem:[#allocation2 + $0x40] sm:$0xff]
          %v759 = vld [vmem:[#allocation2 + $0x48] sm:$0xff]
          %v760 = vld [vmem:[#allocation2 + $0x50] sm:$0xff]
          %v761 = vld [vmem:[#allocation2 + $0x58] sm:$0xff]
          %v762 = vld [vmem:[#allocation2 + $0x60] sm:$0xff]
          %v763 = vld [vmem:[#allocation2 + $0x68] sm:$0xff]
          %v764 = vld [vmem:[#allocation2 + $0x70] sm:$0xff]
          %v765 = vld [vmem:[#allocation2 + $0x78] sm:$0xff]
          %v766 = vld [vmem:[#allocation2 + $0x80] sm:$0xff]
          %v767 = vld [vmem:[#allocation2 + $0x88] sm:$0xff]
          %v768 = vld [vmem:[#allocation2 + $0x90] sm:$0xff]
          %v769 = vld [vmem:[#allocation2 + $0x98] sm:$0xff]
          %v770 = vld [vmem:[#allocation2 + $0xa0] sm:$0xff]
          %v771 = vld [vmem:[#allocation2 + $0xa8] sm:$0xff]
          %v772 = vld [vmem:[#allocation2 + $0xb0] sm:$0xff]
          %v773 = vld [vmem:[#allocation2 + $0xb8] sm:$0xff]
          %v774 = vld [vmem:[#allocation2 + $0xc0] sm:$0xff]
          %v775 = vld [vmem:[#allocation2 + $0xc8] sm:$0xff]
          %v776 = vld [vmem:[#allocation2 + $0xd0] sm:$0xff]
          %v777 = vld [vmem:[#allocation2 + $0xd8] sm:$0xff]
          %v778 = vld [vmem:[#allocation2 + $0xe0] sm:$0xff]
          %v779 = vld [vmem:[#allocation2 + $0xe8] sm:$0xff]
          %v780 = vld [vmem:[#allocation2 + $0xf0] sm:$0xff]
          %v781 = vld [vmem:[#allocation2 + $0xf8] sm:$0xff]
          %v782 = vld [vmem:[#allocation8] sm:$0x1]
          %v784 = vlaneseq
          %v785 = vshrl.u32 %v784, 7
          %v786 = vsub.s32 0, %v785
          %v787 = vrot.slane %v782, %v786
          %v789 = vadd.f32 %v750, %v787
          %v790 = vadd.f32 %v751, %v787
          %v791 = vadd.f32 %v752, %v787
          %v792 = vadd.f32 %v753, %v787
          %v793 = vadd.f32 %v754, %v787
          %v794 = vadd.f32 %v755, %v787
          %v795 = vadd.f32 %v756, %v787
          %v796 = vadd.f32 %v757, %v787
          %v797 = vadd.f32 %v758, %v787
          %v798 = vadd.f32 %v759, %v787
          %v799 = vadd.f32 %v760, %v787
          %v800 = vadd.f32 %v761, %v787
          %v801 = vadd.f32 %v762, %v787
          %v802 = vadd.f32 %v763, %v787
          %v803 = vadd.f32 %v764, %v787
          %v804 = vadd.f32 %v765, %v787
          %v805 = vadd.f32 %v766, %v787
          %v806 = vadd.f32 %v767, %v787
          %v807 = vadd.f32 %v768, %v787
          %v808 = vadd.f32 %v769, %v787
          %v809 = vadd.f32 %v770, %v787
          %v810 = vadd.f32 %v771, %v787
          %v811 = vadd.f32 %v772, %v787
          %v812 = vadd.f32 %v773, %v787
          %v813 = vadd.f32 %v774, %v787
          %v814 = vadd.f32 %v775, %v787
          %v815 = vadd.f32 %v776, %v787
          %v816 = vadd.f32 %v777, %v787
          %v817 = vadd.f32 %v778, %v787
          %v818 = vadd.f32 %v779, %v787
          %v819 = vadd.f32 %v780, %v787
          %v820 = vadd.f32 %v781, %v787
          %821 = vst [vmem:[%s257] sm:$0xff] %v789
          %822 = vst [vmem:[%s257 + $0x8] sm:$0xff] %v790
          %823 = vst [vmem:[%s257 + $0x10] sm:$0xff] %v791
          %824 = vst [vmem:[%s257 + $0x18] sm:$0xff] %v792
          %825 = vst [vmem:[%s257 + $0x20] sm:$0xff] %v793
          %826 = vst [vmem:[%s257 + $0x28] sm:$0xff] %v794
          %827 = vst [vmem:[%s257 + $0x30] sm:$0xff] %v795
          %828 = vst [vmem:[%s257 + $0x38] sm:$0xff] %v796
          %829 = vst [vmem:[%s257 + $0x40] sm:$0xff] %v797
          %830 = vst [vmem:[%s257 + $0x48] sm:$0xff] %v798
          %831 = vst [vmem:[%s257 + $0x50] sm:$0xff] %v799
          %832 = vst [vmem:[%s257 + $0x58] sm:$0xff] %v800
          %833 = vst [vmem:[%s257 + $0x60] sm:$0xff] %v801
          %834 = vst [vmem:[%s257 + $0x68] sm:$0xff] %v802
          %835 = vst [vmem:[%s257 + $0x70] sm:$0xff] %v803
          %836 = vst [vmem:[%s257 + $0x78] sm:$0xff] %v804
          %837 = vst [vmem:[%s257 + $0x80] sm:$0xff] %v805
          %838 = vst [vmem:[%s257 + $0x88] sm:$0xff] %v806
          %839 = vst [vmem:[%s257 + $0x90] sm:$0xff] %v807
          %840 = vst [vmem:[%s257 + $0x98] sm:$0xff] %v808
          %841 = vst [vmem:[%s257 + $0xa0] sm:$0xff] %v809
          %842 = vst [vmem:[%s257 + $0xa8] sm:$0xff] %v810
          %843 = vst [vmem:[%s257 + $0xb0] sm:$0xff] %v811
          %844 = vst [vmem:[%s257 + $0xb8] sm:$0xff] %v812
          %845 = vst [vmem:[%s257 + $0xc0] sm:$0xff] %v813
          %846 = vst [vmem:[%s257 + $0xc8] sm:$0xff] %v814
          %847 = vst [vmem:[%s257 + $0xd0] sm:$0xff] %v815
          %848 = vst [vmem:[%s257 + $0xd8] sm:$0xff] %v816
          %849 = vst [vmem:[%s257 + $0xe0] sm:$0xff] %v817
          %850 = vst [vmem:[%s257 + $0xe8] sm:$0xff] %v818
          %851 = vst [vmem:[%s257 + $0xf0] sm:$0xff] %v819
          %852 = vst [vmem:[%s257 + $0xf8] sm:$0xff] %v820
        $region52: #{tpu_custom_call.1} parent=31 // pred_fallthru
          _
        %s853 = sand.u32 %s132, 1
        %s854 = scalar_lea.sflag [#allocation5], %s853
        %s855 = sand.u32 %s132, 1
        %s856 = smul.addr %s855, 256
        %s857 = scalar_lea.vmem [#allocation9], %s856
        // Predicated region
        $region53: #{tpu_custom_call.1} parent=31 // pred_check
          %p858 = pneg %p142
        $region54: #{tpu_custom_call.1} parent=31 // pred_check_branch
          %860 = sbr.rel (%p858) target = $region56
        $region55: #{tpu_custom_call.1} parent=31 // pred_region
          %s861 = smul.u32 32, %s26
          %s863 = ssub.s32 4096, 4096
          %864 = vsyncadd %s854, %s863
          %s865 = sadd.s32 %s27, %s861
          %s866 = smul.addr %s865, 128
          %s867 = scalar_lea.hbm %s3, %s866
          %s868 = sshll.u32 %s857, 4
          %s869 = int_to_ptr.vmem [resolvable:$true] %s868
          %874 = dma.vmem_to_hbm [thread:$0]  %s869, 4096, %s867, %s854, 128, 128, 8
        $region56: #{tpu_custom_call.1} parent=31 // pred_fallthru
          _
      $region32: #{tpu_custom_call.1} parent=5 // pred_fallthru
        _
      %p875 = scmp.le.s32.totalorder 2, %s16
      // Predicated region
      $region57: #{tpu_custom_call.1} parent=5 // pred_check
        %p876 = pneg %p875
      $region58: #{tpu_custom_call.1} parent=5 // pred_check_branch
        %878 = sbr.rel (%p876) target = $region60
      $region59: #{tpu_custom_call.1} parent=5 // pred_region
        %s879 = ssub.s32 %s16, 2
        // Predicated region
        $region61: #{tpu_custom_call.1} parent=59 // pred_check
          %p880 = pneg %p148
        $region62: #{tpu_custom_call.1} parent=59 // pred_check_branch
          %882 = sbr.rel (%p880) target = $region64
        $region63: #{tpu_custom_call.1} parent=59 // pred_region
          %s883 = sand.u32 %s133, 1
          %s884 = scalar_lea.sflag [#allocation5], %s883
          %s885 = sand.u32 %s133, 1
          %s886 = smul.addr %s885, 256
          %s887 = scalar_lea.vmem [#allocation9], %s886
          %888 = dma.done %s884, 4096
        $region64: #{tpu_custom_call.1} parent=59 // pred_fallthru
          _
      $region60: #{tpu_custom_call.1} parent=5 // pred_fallthru
        _
    $region6: #{tpu_custom_call.1} parent=1 // loop_footer
      %s20 = sadd.s32 1, %s16
    $region7: #{tpu_custom_call.1} parent=1 // loop_footer_branch
      %15 = sbr.rel target = $region3
    $region8: #{tpu_custom_call.1} parent=1 // loop_exit
      _
    %889 = vsyncpa [#allocation4], 1
    %s890 = scalar_lea.sflag [#allocation4], 1
    %891 = vsyncpa %s890, 1
    %892 = vsyncpa [#allocation7], 1
    %893 = vsyncpa [#allocation5], 1
    %s894 = scalar_lea.sflag [#allocation5], 1
    %895 = vsyncpa %s894, 1

</llo_original>
